<compile_context>
chip_gen: v5e
topology: v5e:2x2
jax: 0.10.0
libtpu: 0.0.40
codegen_flags: <defaults>
</compile_context>

<pallas_src>
import jax
import jax.numpy as jnp
from jax.experimental import pallas as pl


def _hyperfc2_fused_kernel(feat_ref, gw_ref, pbw_ref, gb_ref, pbb_ref,
                           x_ref, expand_ref, fold_ref, out_ref):
    """Fused hypernetwork projection + generated FC (all operands in VMEM).

    feat   : (1, 3L)   features [sin(z), cos(z), sqrt(|z|+1e-6)]
    gw     : (3L, H*H) weight generator; column c*H+h corresponds to weight[h, c]
    pbw    : (1, H*H)  projection bias (weight part, same permutation)
    gb     : (3L, H)   bias generator
    pbb    : (1, H)    projection bias (bias part)
    x      : (B, H)
    expand : (H, H*H)  one-hot: expand[c, c*H + h] = 1
    fold   : (H, H*H)  one-hot: fold[h,   c*H + h] = 1
    out    : (B, H)
    """
    f = feat_ref[...]

    # Generated parameters -- stay in VMEM/vregs for the whole kernel.
    # wt_flat[0, c*H + h] == weight[h, c] == weight.T[c, h]
    wt_flat = (jnp.dot(f, gw_ref[...], preferred_element_type=jnp.float32)
               + pbw_ref[...])
    bias = (jnp.dot(f, gb_ref[...], preferred_element_type=jnp.float32)
            + pbb_ref[...])

    # x_rep[b, c*H + h] = x[b, c]
    x_rep = jnp.dot(x_ref[...], expand_ref[...],
                    preferred_element_type=jnp.float32)

    # m[b, c*H + h] = x[b, c] * weight.T[c, h]
    m = x_rep * wt_flat

    # out[b, h] = sum_c m[b, c*H + h]  (contract against fold's lane axis)
    out = jax.lax.dot_general(
        m, fold_ref[...],
        dimension_numbers=(((1,), (1,)), ((), ())),
        preferred_element_type=jnp.float32)

    out_ref[...] = (out + bias).astype(out_ref.dtype)


def prepare_hyperfc2_params(proj_w, proj_b, hidden_size):
    """One-time re-layout of the PyTorch nn.Linear parameters (not in the hot path).

    proj_w : (H*H + H, 3*latent_dim)  -- PyTorch Linear weight layout
    proj_b : (H*H + H,)
    """
    H = hidden_size
    HH = H * H
    L3 = proj_w.shape[1]

    proj_w = jnp.asarray(proj_w, jnp.float32)
    proj_b = jnp.asarray(proj_b, jnp.float32)

    # Weight generator: transpose to (3L, H*H) and permute columns so the
    # generated row is weight.T flattened row-major (index c*H + h <-> weight[h, c]).
    gw = (proj_w[:HH, :].reshape(H, H, L3)   # [h, c, k]
          .transpose(1, 0, 2)                # [c, h, k]
          .reshape(HH, L3).T)                # [k, c*H + h]
    pbw = proj_b[:HH].reshape(H, H).T.reshape(1, HH)

    # Bias generator.
    gb = proj_w[HH:, :].T                    # (3L, H)
    pbb = proj_b[HH:].reshape(1, H)

    # One-hot expand / fold constants (lane-dense (H, H*H) layout, exact in f32).
    j = jnp.arange(HH)[None, :]
    c = jnp.arange(H)[:, None]
    expand = (j // H == c).astype(jnp.float32)   # (H, H*H)
    fold = (j % H == c).astype(jnp.float32)      # (H, H*H)

    return {"gw": gw, "pbw": pbw, "gb": gb, "pbb": pbb,
            "expand": expand, "fold": fold}


@jax.jit
def hyperfc2_forward(x, z, params):
    """Forward pass equivalent to HyperFC2.forward.

    x : (B, H) float32, z : (1, latent_dim) float32,
    params : output of prepare_hyperfc2_params.
    """
    B, H = x.shape
    HH = H * H

    # Tiny hypernetwork feature construction (one fused XLA op over 30 values).
    feat = jnp.concatenate(
        [jnp.sin(z), jnp.cos(z), jnp.sqrt(jnp.abs(z) + 1e-6)], axis=1)
    L3 = feat.shape[1]

    return pl.pallas_call(
        _hyperfc2_fused_kernel,
        grid=(1,),
        out_shape=jax.ShapeDtypeStruct((B, H), jnp.float32),
        in_specs=[
            pl.BlockSpec((1, L3), lambda i: (0, 0)),    # feat
            pl.BlockSpec((L3, HH), lambda i: (0, 0)),   # gw
            pl.BlockSpec((1, HH), lambda i: (0, 0)),    # pbw
            pl.BlockSpec((L3, H), lambda i: (0, 0)),    # gb
            pl.BlockSpec((1, H), lambda i: (0, 0)),     # pbb
            pl.BlockSpec((B, H), lambda i: (0, 0)),     # x
            pl.BlockSpec((H, HH), lambda i: (0, 0)),    # expand
            pl.BlockSpec((H, HH), lambda i: (0, 0)),    # fold
        ],
        out_specs=pl.BlockSpec((B, H), lambda i: (0, 0)),
    )(feat, params["gw"], params["pbw"], params["gb"], params["pbb"],
      x, params["expand"], params["fold"])


def _reference_forward(x, z, proj_w, proj_b, hidden_size):
    """Pure-JAX reference mirroring the PyTorch module exactly."""
    H = hidden_size
    a = jnp.sin(z)
    b = jnp.cos(z)
    c = jnp.sqrt(jnp.abs(z) + 1e-6)
    features = jnp.concatenate([a, b, c], axis=1)
    hyper_out = features @ proj_w.T + proj_b
    weight = hyper_out[:, : H * H].reshape(H, H)
    bias = hyper_out[:, H * H:]
    return x @ weight.T + bias


if __name__ == "__main__":
    hidden_size = 32
    latent_dim = 10
    batch = 8

    key = jax.random.PRNGKey(0)
    k_z, k_pw, k_pb, k_x = jax.random.split(key, 4)

    # Deterministic parameter init (shapes per HyperFC2.__init__)
    z = jax.random.normal(k_z, (1, latent_dim), dtype=jnp.float32)
    fan_in = latent_dim * 3
    bound = 1.0 / jnp.sqrt(jnp.float32(fan_in))
    proj_w = jax.random.uniform(
        k_pw, (hidden_size * hidden_size + hidden_size, fan_in),
        dtype=jnp.float32, minval=-bound, maxval=bound)
    proj_b = jax.random.uniform(
        k_pb, (hidden_size * hidden_size + hidden_size,),
        dtype=jnp.float32, minval=-bound, maxval=bound)

    x = jax.random.normal(k_x, (batch, hidden_size), dtype=jnp.float32)

    # One-time parameter re-layout (outside the per-call hot path).
    params = prepare_hyperfc2_params(proj_w, proj_b, hidden_size)

    out = hyperfc2_forward(x, z, params)
    out = jax.block_until_ready(out)

    ref = _reference_forward(x, z, proj_w, proj_b, hidden_size)
    assert out.shape == (batch, hidden_size)
    assert jnp.allclose(out, ref, atol=1e-4, rtol=1e-4), "mismatch vs reference"

    print("KERNEL_OK")
</pallas_src>

<mosaic_0001>
module attributes {stable_mosaic.version = 11 : i64} {
  func.func @_hyperfc2_fused_kernel(%arg0: i32, %arg1: memref<1x30xf32, #tpu.memory_space<vmem>>, %arg2: memref<30x1024xf32, #tpu.memory_space<vmem>>, %arg3: memref<1x1024xf32, #tpu.memory_space<vmem>>, %arg4: memref<30x32xf32, #tpu.memory_space<vmem>>, %arg5: memref<1x32xf32, #tpu.memory_space<vmem>>, %arg6: memref<8x32xf32, #tpu.memory_space<vmem>>, %arg7: memref<32x1024xf32, #tpu.memory_space<vmem>>, %arg8: memref<32x1024xf32, #tpu.memory_space<vmem>>, %arg9: memref<8x32xf32, #tpu.memory_space<vmem>>) attributes {dimension_semantics = [#tpu.dimension_semantics<arbitrary>], iteration_bounds = array<i64: 1>, scalar_prefetch = 0 : i64, scratch_operands = 0 : i64, tpu.core_type = #tpu.core_type<tc>, window_params = [{pipeline_mode = #tpu.pipeline_mode<synchronous>, transform_indices = @transform_0, window_bounds = array<i64: 1, 30>}, {pipeline_mode = #tpu.pipeline_mode<synchronous>, transform_indices = @transform_1, window_bounds = array<i64: 30, 1024>}, {pipeline_mode = #tpu.pipeline_mode<synchronous>, transform_indices = @transform_2, window_bounds = array<i64: 1, 1024>}, {pipeline_mode = #tpu.pipeline_mode<synchronous>, transform_indices = @transform_3, window_bounds = array<i64: 30, 32>}, {pipeline_mode = #tpu.pipeline_mode<synchronous>, transform_indices = @transform_4, window_bounds = array<i64: 1, 32>}, {pipeline_mode = #tpu.pipeline_mode<synchronous>, transform_indices = @transform_5, window_bounds = array<i64: 8, 32>}, {pipeline_mode = #tpu.pipeline_mode<synchronous>, transform_indices = @transform_6, window_bounds = array<i64: 32, 1024>}, {pipeline_mode = #tpu.pipeline_mode<synchronous>, transform_indices = @transform_7, window_bounds = array<i64: 32, 1024>}, {pipeline_mode = #tpu.pipeline_mode<synchronous>, transform_indices = @transform_8, window_bounds = array<i64: 8, 32>}]} {
    %c0 = arith.constant 0 : index
    %c0_0 = arith.constant 0 : index
    %0 = vector.load %arg1[%c0, %c0_0] : memref<1x30xf32, #tpu.memory_space<vmem>>, vector<1x30xf32>
    %c0_1 = arith.constant 0 : index
    %c0_2 = arith.constant 0 : index
    %1 = vector.load %arg2[%c0_1, %c0_2] : memref<30x1024xf32, #tpu.memory_space<vmem>>, vector<30x1024xf32>
    %cst = arith.constant dense<0.000000e+00> : vector<1x1024xf32>
    %2 = tpu.matmul %0, %1, %cst {dimension_numbers = #tpu.dot_dimension_numbers<[1], [0], [0], [1], [0, 0, 1, 1], [], []>} : vector<1x30xf32>, vector<30x1024xf32>, vector<1x1024xf32> -> vector<1x1024xf32>
    %c0_3 = arith.constant 0 : index
    %c0_4 = arith.constant 0 : index
    %3 = vector.load %arg3[%c0_3, %c0_4] : memref<1x1024xf32, #tpu.memory_space<vmem>>, vector<1x1024xf32>
    %4 = arith.addf %2, %3 : vector<1x1024xf32>
    %c0_5 = arith.constant 0 : index
    %c0_6 = arith.constant 0 : index
    %5 = vector.load %arg4[%c0_5, %c0_6] : memref<30x32xf32, #tpu.memory_space<vmem>>, vector<30x32xf32>
    %cst_7 = arith.constant dense<0.000000e+00> : vector<1x32xf32>
    %6 = tpu.matmul %0, %5, %cst_7 {dimension_numbers = #tpu.dot_dimension_numbers<[1], [0], [0], [1], [0, 0, 1, 1], [], []>} : vector<1x30xf32>, vector<30x32xf32>, vector<1x32xf32> -> vector<1x32xf32>
    %c0_8 = arith.constant 0 : index
    %c0_9 = arith.constant 0 : index
    %7 = vector.load %arg5[%c0_8, %c0_9] : memref<1x32xf32, #tpu.memory_space<vmem>>, vector<1x32xf32>
    %8 = arith.addf %6, %7 : vector<1x32xf32>
    %c0_10 = arith.constant 0 : index
    %c0_11 = arith.constant 0 : index
    %9 = vector.load %arg6[%c0_10, %c0_11] : memref<8x32xf32, #tpu.memory_space<vmem>>, vector<8x32xf32>
    %c0_12 = arith.constant 0 : index
    %c0_13 = arith.constant 0 : index
    %10 = vector.load %arg7[%c0_12, %c0_13] : memref<32x1024xf32, #tpu.memory_space<vmem>>, vector<32x1024xf32>
    %cst_14 = arith.constant dense<0.000000e+00> : vector<8x1024xf32>
    %11 = tpu.matmul %9, %10, %cst_14 {dimension_numbers = #tpu.dot_dimension_numbers<[1], [0], [0], [1], [0, 0, 1, 1], [], []>} : vector<8x32xf32>, vector<32x1024xf32>, vector<8x1024xf32> -> vector<8x1024xf32>
    %12 = vector.broadcast %4 : vector<1x1024xf32> to vector<8x1024xf32>
    %13 = arith.mulf %11, %12 : vector<8x1024xf32>
    %c0_15 = arith.constant 0 : index
    %c0_16 = arith.constant 0 : index
    %14 = vector.load %arg8[%c0_15, %c0_16] : memref<32x1024xf32, #tpu.memory_space<vmem>>, vector<32x1024xf32>
    %cst_17 = arith.constant dense<0.000000e+00> : vector<8x32xf32>
    %15 = tpu.matmul %13, %14, %cst_17 {dimension_numbers = #tpu.dot_dimension_numbers<[1], [1], [0], [0], [0, 0, 1, 0], [], []>} : vector<8x1024xf32>, vector<32x1024xf32>, vector<8x32xf32> -> vector<8x32xf32>
    %16 = vector.broadcast %8 : vector<1x32xf32> to vector<8x32xf32>
    %17 = arith.addf %15, %16 : vector<8x32xf32>
    %c0_18 = arith.constant 0 : index
    %c0_19 = arith.constant 0 : index
    %18 = vector.load %arg9[%c0_18, %c0_19] : memref<8x32xf32, #tpu.memory_space<vmem>>, vector<8x32xf32>
    tpu.vector_store %arg9[%c0_18, %c0_19], %17 {strides = array<i32>} : memref<8x32xf32, #tpu.memory_space<vmem>>, vector<8x32xf32>,
    return
  }
  func.func @transform_0(%arg0: i32) -> (i32, i32) {
    %c0_i32 = arith.constant 0 : i32
    %c0_i32_0 = arith.constant 0 : i32
    %c0_i32_1 = arith.constant 0 : i32
    return %c0_i32, %c0_i32_0 : i32, i32
  }
  func.func @transform_1(%arg0: i32) -> (i32, i32) {
    %c0_i32 = arith.constant 0 : i32
    %c0_i32_0 = arith.constant 0 : i32
    %c0_i32_1 = arith.constant 0 : i32
    return %c0_i32, %c0_i32_0 : i32, i32
  }
  func.func @transform_2(%arg0: i32) -> (i32, i32) {
    %c0_i32 = arith.constant 0 : i32
    %c0_i32_0 = arith.constant 0 : i32
    %c0_i32_1 = arith.constant 0 : i32
    return %c0_i32, %c0_i32_0 : i32, i32
  }
  func.func @transform_3(%arg0: i32) -> (i32, i32) {
    %c0_i32 = arith.constant 0 : i32
    %c0_i32_0 = arith.constant 0 : i32
    %c0_i32_1 = arith.constant 0 : i32
    return %c0_i32, %c0_i32_0 : i32, i32
  }
  func.func @transform_4(%arg0: i32) -> (i32, i32) {
    %c0_i32 = arith.constant 0 : i32
    %c0_i32_0 = arith.constant 0 : i32
    %c0_i32_1 = arith.constant 0 : i32
    return %c0_i32, %c0_i32_0 : i32, i32
  }
  func.func @transform_5(%arg0: i32) -> (i32, i32) {
    %c0_i32 = arith.constant 0 : i32
    %c0_i32_0 = arith.constant 0 : i32
    %c0_i32_1 = arith.constant 0 : i32
    return %c0_i32, %c0_i32_0 : i32, i32
  }
  func.func @transform_6(%arg0: i32) -> (i32, i32) {
    %c0_i32 = arith.constant 0 : i32
    %c0_i32_0 = arith.constant 0 : i32
    %c0_i32_1 = arith.constant 0 : i32
    return %c0_i32, %c0_i32_0 : i32, i32
  }
  func.func @transform_7(%arg0: i32) -> (i32, i32) {
    %c0_i32 = arith.constant 0 : i32
    %c0_i32_0 = arith.constant 0 : i32
    %c0_i32_1 = arith.constant 0 : i32
    return %c0_i32, %c0_i32_0 : i32, i32
  }
  func.func @transform_8(%arg0: i32) -> (i32, i32) {
    %c0_i32 = arith.constant 0 : i32
    %c0_i32_0 = arith.constant 0 : i32
    %c0_i32_1 = arith.constant 0 : i32
    return %c0_i32, %c0_i32_0 : i32, i32
  }
}

</mosaic_0001>

<llo_original>
// kernel: hyperfc2_forward.1
$region0: #{hyperfc2_forward.1}
  #allocation0 [shape = 'u32[]', space=smem, size = 0x4, offset = 0x4, fixed_abs, tag = 'smem constant byte address 0x4 - core index']
  #allocation1 [shape = 'u32[72,128]{1,0:T(1,128)}', space=vmem, size = 0x9000, scoped, tag = 'internal scratch']
  %s0 = inlined_call_operand.vmem [shape: f32[1,30], index: 0, kind: input, shape index: {}]
  %s1 = inlined_call_operand.hbm [shape: f32[30,1024], index: 1, kind: input, shape index: {}]
  %s2 = inlined_call_operand.vmem [shape: f32[1,1024], index: 2, kind: input, shape index: {}]
  %s3 = inlined_call_operand.hbm [shape: f32[30,32], index: 3, kind: input, shape index: {}]
  %s4 = inlined_call_operand.vmem [shape: f32[1,32], index: 4, kind: input, shape index: {}]
  %s5 = inlined_call_operand.hbm [shape: f32[8,32], index: 5, kind: input, shape index: {}]
  %s6 = inlined_call_operand.hbm [shape: f32[32,1024], index: 6, kind: input, shape index: {}]
  %s7 = inlined_call_operand.hbm [shape: f32[32,1024], index: 7, kind: input, shape index: {}]
  %s8 = inlined_call_operand.hbm [shape: f32[8,32], index: 8, kind: output, shape index: {}]
  %s9 = sld [smem:[#allocation0]]
  $region62: #{hyperfc2_forward.1} parent=0
    _
  %s11 = ssub.s32 1, %s9
  %s12 = scalar_select 0, %s11, %s9
  $region1: #{hyperfc2_forward.1} parent=0
    #allocation2 [shape = 'u8[131072]{0}', space=vmem, size = 0x20000, scoped, tag = 'input window, operand 1, single buffered']
    #allocation3 [shape = 's32[1]{0}', space=sflag, size = 0x4, scoped, tag = 'scoped memory for hyperfc2_forward.1']
    #allocation4 [shape = 's32[1]{0}', space=sflag, size = 0x4, scoped, tag = 'scoped memory for hyperfc2_forward.1']
    #allocation5 [shape = 'u8[16384]{0}', space=vmem, size = 0x4000, scoped, tag = 'input window, operand 3, single buffered']
    #allocation6 [shape = 's32[1]{0}', space=sflag, size = 0x4, scoped, tag = 'scoped memory for hyperfc2_forward.1']
    #allocation7 [shape = 'u8[4096]{0}', space=vmem, size = 0x1000, scoped, tag = 'input window, operand 5, single buffered']
    #allocation8 [shape = 'u8[131072]{0}', space=vmem, size = 0x20000, scoped, tag = 'input window, operand 6, single buffered']
    #allocation9 [shape = 's32[1]{0}', space=sflag, size = 0x4, scoped, tag = 'scoped memory for hyperfc2_forward.1']
    #allocation10 [shape = 'u8[131072]{0}', space=vmem, size = 0x20000, scoped, tag = 'input window, operand 7, single buffered']
    #allocation11 [shape = 'u8[4096]{0}', space=vmem, size = 0x1000, scoped, tag = 'output window, operand 0, single buffered']
    %13 = vsyncpa [#allocation3], 0
    %14 = vsyncpa [#allocation6], 0
    %15 = vsyncpa [#allocation9], 0
    %16 = vsyncpa [#allocation4], 0
    // Predicated region
    $region2: #{hyperfc2_forward.1} parent=1 // pred_check
      _
    $region3: #{hyperfc2_forward.1} parent=1 // pred_check_branch
      %18 = sbr.rel (0) target = $region5
    $region4: #{hyperfc2_forward.1} parent=1 // pred_region
      _
    $region5: #{hyperfc2_forward.1} parent=1 // pred_fallthru
      _
    // Predicated region
    $region6: #{hyperfc2_forward.1} parent=1 // pred_check
      _
    $region7: #{hyperfc2_forward.1} parent=1 // pred_check_branch
      %20 = sbr.rel (0) target = $region9
    $region8: #{hyperfc2_forward.1} parent=1 // pred_region
      %22 = vsyncadd [#allocation3], 0
      %s23 = sshll.u32 %s1, 4
      %s24 = int_to_ptr.hbm [resolvable:$true] %s23
      %s25 = sshll.u32 [#allocation2], 4
      %s26 = int_to_ptr.vmem [resolvable:$true] %s25
      %31 = dma.hbm_to_vmem [thread:$0]  %s24, 4096, %s26, [#allocation3], 1024, 1024, 64
    $region9: #{hyperfc2_forward.1} parent=1 // pred_fallthru
      _
    // Predicated region
    $region10: #{hyperfc2_forward.1} parent=1 // pred_check
      _
    $region11: #{hyperfc2_forward.1} parent=1 // pred_check_branch
      %33 = sbr.rel (0) target = $region13
    $region12: #{hyperfc2_forward.1} parent=1 // pred_region
      _
    $region13: #{hyperfc2_forward.1} parent=1 // pred_fallthru
      _
    // Predicated region
    $region14: #{hyperfc2_forward.1} parent=1 // pred_check
      _
    $region15: #{hyperfc2_forward.1} parent=1 // pred_check_branch
      %35 = sbr.rel (0) target = $region17
    $region16: #{hyperfc2_forward.1} parent=1 // pred_region
      %37 = vsyncadd [#allocation6], 0
      %s38 = sshll.u32 %s3, 4
      %s39 = int_to_ptr.hbm [resolvable:$true] %s38
      %s40 = sshll.u32 [#allocation5], 4
      %s41 = int_to_ptr.vmem [resolvable:$true] %s40
      %46 = dma.hbm_to_vmem [thread:$0]  %s39, 512, %s41, [#allocation6], 128, 128, 8
    $region17: #{hyperfc2_forward.1} parent=1 // pred_fallthru
      _
    // Predicated region
    $region18: #{hyperfc2_forward.1} parent=1 // pred_check
      _
    $region19: #{hyperfc2_forward.1} parent=1 // pred_check_branch
      %48 = sbr.rel (0) target = $region21
    $region20: #{hyperfc2_forward.1} parent=1 // pred_region
      _
    $region21: #{hyperfc2_forward.1} parent=1 // pred_fallthru
      _
    // Predicated region
    $region22: #{hyperfc2_forward.1} parent=1 // pred_check
      _
    $region23: #{hyperfc2_forward.1} parent=1 // pred_check_branch
      %50 = sbr.rel (0) target = $region25
    $region24: #{hyperfc2_forward.1} parent=1 // pred_region
      %52 = vsyncadd [#allocation6], 0
      %s54 = sshll.u32 %s5, 4
      %s55 = int_to_ptr.hbm [resolvable:$true] %s54
      %s56 = sshll.u32 [#allocation7], 4
      %s57 = int_to_ptr.vmem [resolvable:$true] %s56
      %59 = dma.hbm_to_vmem [thread:$0]  %s55, 128, %s57, [#allocation6]
    $region25: #{hyperfc2_forward.1} parent=1 // pred_fallthru
      _
    // Predicated region
    $region26: #{hyperfc2_forward.1} parent=1 // pred_check
      _
    $region27: #{hyperfc2_forward.1} parent=1 // pred_check_branch
      %61 = sbr.rel (0) target = $region29
    $region28: #{hyperfc2_forward.1} parent=1 // pred_region
      %63 = vsyncadd [#allocation9], 0
      %s64 = sshll.u32 %s6, 4
      %s65 = int_to_ptr.hbm [resolvable:$true] %s64
      %s66 = sshll.u32 [#allocation8], 4
      %s67 = int_to_ptr.vmem [resolvable:$true] %s66
      %72 = dma.hbm_to_vmem [thread:$0]  %s65, 4096, %s67, [#allocation9], 1024, 1024, 64
    $region29: #{hyperfc2_forward.1} parent=1 // pred_fallthru
      _
    // Predicated region
    $region30: #{hyperfc2_forward.1} parent=1 // pred_check
      _
    $region31: #{hyperfc2_forward.1} parent=1 // pred_check_branch
      %74 = sbr.rel (0) target = $region33
    $region32: #{hyperfc2_forward.1} parent=1 // pred_region
      %76 = vsyncadd [#allocation9], 0
      %s77 = sshll.u32 %s7, 4
      %s78 = int_to_ptr.hbm [resolvable:$true] %s77
      %s79 = sshll.u32 [#allocation10], 4
      %s80 = int_to_ptr.vmem [resolvable:$true] %s79
      %85 = dma.hbm_to_vmem [thread:$0]  %s78, 4096, %s80, [#allocation9], 1024, 1024, 64
    $region33: #{hyperfc2_forward.1} parent=1 // pred_fallthru
      _
    // Predicated region
    $region34: #{hyperfc2_forward.1} parent=1 // pred_check
      _
    $region35: #{hyperfc2_forward.1} parent=1 // pred_check_branch
      %87 = sbr.rel (0) target = $region37
    $region36: #{hyperfc2_forward.1} parent=1 // pred_region
      %89 = dma.done [#allocation3], 4096
    $region37: #{hyperfc2_forward.1} parent=1 // pred_fallthru
      _
    // Predicated region
    $region38: #{hyperfc2_forward.1} parent=1 // pred_check
      _
    $region39: #{hyperfc2_forward.1} parent=1 // pred_check_branch
      %91 = sbr.rel (0) target = $region41
    $region40: #{hyperfc2_forward.1} parent=1 // pred_region
      %93 = dma.done [#allocation6], 512
    $region41: #{hyperfc2_forward.1} parent=1 // pred_fallthru
      _
    // Predicated region
    $region42: #{hyperfc2_forward.1} parent=1 // pred_check
      _
    $region43: #{hyperfc2_forward.1} parent=1 // pred_check_branch
      %95 = sbr.rel (0) target = $region45
    $region44: #{hyperfc2_forward.1} parent=1 // pred_region
      %97 = dma.done [#allocation6], 128
    $region45: #{hyperfc2_forward.1} parent=1 // pred_fallthru
      _
    // Predicated region
    $region46: #{hyperfc2_forward.1} parent=1 // pred_check
      _
    $region47: #{hyperfc2_forward.1} parent=1 // pred_check_branch
      %99 = sbr.rel (0) target = $region49
    $region48: #{hyperfc2_forward.1} parent=1 // pred_region
      %101 = dma.done [#allocation9], 4096
    $region49: #{hyperfc2_forward.1} parent=1 // pred_fallthru
      _
    // Predicated region
    $region50: #{hyperfc2_forward.1} parent=1 // pred_check
      _
    $region51: #{hyperfc2_forward.1} parent=1 // pred_check_branch
      %103 = sbr.rel (0) target = $region53
    $region52: #{hyperfc2_forward.1} parent=1 // pred_region
      %105 = dma.done [#allocation9], 4096
    $region53: #{hyperfc2_forward.1} parent=1 // pred_fallthru
      _
    %v106 = vld [vmem:[%s0] sm:$0x1]
    %v107 = vld [vmem:[#allocation2] sm:$0xff]
    %v108 = vld [vmem:[#allocation2 + $0x8] sm:$0xff]
    %v109 = vld [vmem:[#allocation2 + $0x10] sm:$0xff]
    %v110 = vld [vmem:[#allocation2 + $0x18] sm:$0xff]
    %v111 = vld [vmem:[#allocation2 + $0x20] sm:$0xff]
    %v112 = vld [vmem:[#allocation2 + $0x28] sm:$0xff]
    %v113 = vld [vmem:[#allocation2 + $0x30] sm:$0xff]
    %v114 = vld [vmem:[#allocation2 + $0x38] sm:$0xff]
    %v115 = vld [vmem:[#allocation2 + $0x40] sm:$0xff]
    %v116 = vld [vmem:[#allocation2 + $0x48] sm:$0xff]
    %v117 = vld [vmem:[#allocation2 + $0x50] sm:$0xff]
    %v118 = vld [vmem:[#allocation2 + $0x58] sm:$0xff]
    %v119 = vld [vmem:[#allocation2 + $0x60] sm:$0xff]
    %v120 = vld [vmem:[#allocation2 + $0x68] sm:$0xff]
    %v121 = vld [vmem:[#allocation2 + $0x70] sm:$0xff]
    %v122 = vld [vmem:[#allocation2 + $0x78] sm:$0xff]
    %v123 = vld [vmem:[#allocation2 + $0x80] sm:$0xff]
    %v124 = vld [vmem:[#allocation2 + $0x88] sm:$0xff]
    %v125 = vld [vmem:[#allocation2 + $0x90] sm:$0xff]
    %v126 = vld [vmem:[#allocation2 + $0x98] sm:$0xff]
    %v127 = vld [vmem:[#allocation2 + $0xa0] sm:$0xff]
    %v128 = vld [vmem:[#allocation2 + $0xa8] sm:$0xff]
    %v129 = vld [vmem:[#allocation2 + $0xb0] sm:$0xff]
    %v130 = vld [vmem:[#allocation2 + $0xb8] sm:$0xff]
    %v131 = vld [vmem:[#allocation2 + $0xc0] sm:$0x3f]
    %v132 = vld [vmem:[#allocation2 + $0xc8] sm:$0x3f]
    %v133 = vld [vmem:[#allocation2 + $0xd0] sm:$0x3f]
    %v134 = vld [vmem:[#allocation2 + $0xd8] sm:$0x3f]
    %v135 = vld [vmem:[#allocation2 + $0xe0] sm:$0x3f]
    %v136 = vld [vmem:[#allocation2 + $0xe8] sm:$0x3f]
    %v137 = vld [vmem:[#allocation2 + $0xf0] sm:$0x3f]
    %v138 = vld [vmem:[#allocation2 + $0xf8] sm:$0x3f]
    %v139 = vld [vmem:[%s2] sm:$0xff]
    %v141 = vperm.slane %v139, 0
    %v142 = vperm.slane %v139, 1
    %v143 = vperm.slane %v139, 2
    %v144 = vperm.slane %v139, 3
    %v145 = vperm.slane %v139, 4
    %v146 = vperm.slane %v139, 5
    %v147 = vperm.slane %v139, 6
    %v148 = vperm.slane %v139, 7
    %vm157 = vcmask 244736
    %v159 = vsel %vm157, %v106, 0
    %vm161 = vcmask 1045504
    %v163 = vsel %vm161, %v131, 0
    %v166 = vsel %vm161, %v132, 0
    %v169 = vsel %vm161, %v133, 0
    %v172 = vsel %vm161, %v134, 0
    %v175 = vsel %vm161, %v135, 0
    %v178 = vsel %vm161, %v136, 0
    %v181 = vsel %vm161, %v137, 0
    %v184 = vsel %vm161, %v138, 0
    %186 = vmatpush.msra.mxu0 0.0
    %187 = vmatpush.msra.mxu0 0.0
    %188 = vmatpush.msra.mxu0 0.0
    %189 = vmatpush.msra.mxu0 0.0
    %190 = vmatpush.msra.mxu0 0.0
    %191 = vmatpush.msra.mxu0 0.0
    %192 = vmatpush.msra.mxu0 0.0
    %193 = vmatpush.msra.mxu0 0.0
    %194 = vmatpush.msra.mxu0 0.0
    %195 = vmatpush.msra.mxu0 0.0
    %196 = vmatpush.msra.mxu0 0.0
    %197 = vmatpush.msra.mxu0 0.0
    %198 = vmatpush.msra.mxu0 %v163
    %199 = vmatpush.msra.mxu0 %v123
    %200 = vmatpush.msra.mxu0 %v115
    %201 = vmatpush.msra.mxu0 %v107
    %202 = vmatmul.f32.gmra.mxu0 %v159
    %v203 = vpop.f32.mrf.mxu0
    %v204 = vadd.f32 %v141, %v203
    %205 = vdwg.mxu0
    %206 = vmatpush.msra.mxu0 0.0
    %207 = vmatpush.msra.mxu0 0.0
    %208 = vmatpush.msra.mxu0 0.0
    %209 = vmatpush.msra.mxu0 0.0
    %210 = vmatpush.msra.mxu0 0.0
    %211 = vmatpush.msra.mxu0 0.0
    %212 = vmatpush.msra.mxu0 0.0
    %213 = vmatpush.msra.mxu0 0.0
    %214 = vmatpush.msra.mxu0 0.0
    %215 = vmatpush.msra.mxu0 0.0
    %216 = vmatpush.msra.mxu0 0.0
    %217 = vmatpush.msra.mxu0 0.0
    %218 = vmatpush.msra.mxu0 %v166
    %219 = vmatpush.msra.mxu0 %v124
    %220 = vmatpush.msra.mxu0 %v116
    %221 = vmatpush.msra.mxu0 %v108
    %222 = vmatmul.f32.gmra.mxu0 %v159
    %v223 = vpop.f32.mrf.mxu0
    %v224 = vadd.f32 %v142, %v223
    %225 = vdwg.mxu0
    %226 = vmatpush.msra.mxu0 0.0
    %227 = vmatpush.msra.mxu0 0.0
    %228 = vmatpush.msra.mxu0 0.0
    %229 = vmatpush.msra.mxu0 0.0
    %230 = vmatpush.msra.mxu0 0.0
    %231 = vmatpush.msra.mxu0 0.0
    %232 = vmatpush.msra.mxu0 0.0
    %233 = vmatpush.msra.mxu0 0.0
    %234 = vmatpush.msra.mxu0 0.0
    %235 = vmatpush.msra.mxu0 0.0
    %236 = vmatpush.msra.mxu0 0.0
    %237 = vmatpush.msra.mxu0 0.0
    %238 = vmatpush.msra.mxu0 %v169
    %239 = vmatpush.msra.mxu0 %v125
    %240 = vmatpush.msra.mxu0 %v117
    %241 = vmatpush.msra.mxu0 %v109
    %242 = vmatmul.f32.gmra.mxu0 %v159
    %v243 = vpop.f32.mrf.mxu0
    %v244 = vadd.f32 %v143, %v243
    %245 = vdwg.mxu0
    %246 = vmatpush.msra.mxu0 0.0
    %247 = vmatpush.msra.mxu0 0.0
    %248 = vmatpush.msra.mxu0 0.0
    %249 = vmatpush.msra.mxu0 0.0
    %250 = vmatpush.msra.mxu0 0.0
    %251 = vmatpush.msra.mxu0 0.0
    %252 = vmatpush.msra.mxu0 0.0
    %253 = vmatpush.msra.mxu0 0.0
    %254 = vmatpush.msra.mxu0 0.0
    %255 = vmatpush.msra.mxu0 0.0
    %256 = vmatpush.msra.mxu0 0.0
    %257 = vmatpush.msra.mxu0 0.0
    %258 = vmatpush.msra.mxu0 %v172
    %259 = vmatpush.msra.mxu0 %v126
    %260 = vmatpush.msra.mxu0 %v118
    %261 = vmatpush.msra.mxu0 %v110
    %262 = vmatmul.f32.gmra.mxu0 %v159
    %v263 = vpop.f32.mrf.mxu0
    %v264 = vadd.f32 %v144, %v263
    %265 = vdwg.mxu0
    %266 = vmatpush.msra.mxu0 0.0
    %267 = vmatpush.msra.mxu0 0.0
    %268 = vmatpush.msra.mxu0 0.0
    %269 = vmatpush.msra.mxu0 0.0
    %270 = vmatpush.msra.mxu0 0.0
    %271 = vmatpush.msra.mxu0 0.0
    %272 = vmatpush.msra.mxu0 0.0
    %273 = vmatpush.msra.mxu0 0.0
    %274 = vmatpush.msra.mxu0 0.0
    %275 = vmatpush.msra.mxu0 0.0
    %276 = vmatpush.msra.mxu0 0.0
    %277 = vmatpush.msra.mxu0 0.0
    %278 = vmatpush.msra.mxu0 %v175
    %279 = vmatpush.msra.mxu0 %v127
    %280 = vmatpush.msra.mxu0 %v119
    %281 = vmatpush.msra.mxu0 %v111
    %282 = vmatmul.f32.gmra.mxu0 %v159
    %v283 = vpop.f32.mrf.mxu0
    %v284 = vadd.f32 %v145, %v283
    %285 = vdwg.mxu0
    %286 = vmatpush.msra.mxu0 0.0
    %287 = vmatpush.msra.mxu0 0.0
    %288 = vmatpush.msra.mxu0 0.0
    %289 = vmatpush.msra.mxu0 0.0
    %290 = vmatpush.msra.mxu0 0.0
    %291 = vmatpush.msra.mxu0 0.0
    %292 = vmatpush.msra.mxu0 0.0
    %293 = vmatpush.msra.mxu0 0.0
    %294 = vmatpush.msra.mxu0 0.0
    %295 = vmatpush.msra.mxu0 0.0
    %296 = vmatpush.msra.mxu0 0.0
    %297 = vmatpush.msra.mxu0 0.0
    %298 = vmatpush.msra.mxu0 %v178
    %299 = vmatpush.msra.mxu0 %v128
    %300 = vmatpush.msra.mxu0 %v120
    %301 = vmatpush.msra.mxu0 %v112
    %302 = vmatmul.f32.gmra.mxu0 %v159
    %v303 = vpop.f32.mrf.mxu0
    %v304 = vadd.f32 %v146, %v303
    %305 = vdwg.mxu0
    %306 = vmatpush.msra.mxu0 0.0
    %307 = vmatpush.msra.mxu0 0.0
    %308 = vmatpush.msra.mxu0 0.0
    %309 = vmatpush.msra.mxu0 0.0
    %310 = vmatpush.msra.mxu0 0.0
    %311 = vmatpush.msra.mxu0 0.0
    %312 = vmatpush.msra.mxu0 0.0
    %313 = vmatpush.msra.mxu0 0.0
    %314 = vmatpush.msra.mxu0 0.0
    %315 = vmatpush.msra.mxu0 0.0
    %316 = vmatpush.msra.mxu0 0.0
    %317 = vmatpush.msra.mxu0 0.0
    %318 = vmatpush.msra.mxu0 %v181
    %319 = vmatpush.msra.mxu0 %v129
    %320 = vmatpush.msra.mxu0 %v121
    %321 = vmatpush.msra.mxu0 %v113
    %322 = vmatmul.f32.gmra.mxu0 %v159
    %v323 = vpop.f32.mrf.mxu0
    %v324 = vadd.f32 %v147, %v323
    %325 = vdwg.mxu0
    %326 = vmatpush.msra.mxu0 0.0
    %327 = vmatpush.msra.mxu0 0.0
    %328 = vmatpush.msra.mxu0 0.0
    %329 = vmatpush.msra.mxu0 0.0
    %330 = vmatpush.msra.mxu0 0.0
    %331 = vmatpush.msra.mxu0 0.0
    %332 = vmatpush.msra.mxu0 0.0
    %333 = vmatpush.msra.mxu0 0.0
    %334 = vmatpush.msra.mxu0 0.0
    %335 = vmatpush.msra.mxu0 0.0
    %336 = vmatpush.msra.mxu0 0.0
    %337 = vmatpush.msra.mxu0 0.0
    %338 = vmatpush.msra.mxu0 %v184
    %339 = vmatpush.msra.mxu0 %v130
    %340 = vmatpush.msra.mxu0 %v122
    %341 = vmatpush.msra.mxu0 %v114
    %342 = vmatmul.f32.gmra.mxu0 %v159
    %v343 = vpop.f32.mrf.mxu0
    %v344 = vadd.f32 %v148, %v343
    %345 = vdwg.mxu0
    %v346 = vld [vmem:[#allocation5] sm:$0xff]
    %v347 = vld [vmem:[#allocation5 + $0x8] sm:$0xff]
    %v348 = vld [vmem:[#allocation5 + $0x10] sm:$0xff]
    %v349 = vld [vmem:[#allocation5 + $0x18] sm:$0x3f]
    %v350 = vld [vmem:[%s4] sm:$0x1]
    %v352 = vsel %vm161, %v349, 0
    %354 = vmatpush.msra.mxu0 0.0
    %355 = vmatpush.msra.mxu0 0.0
    %356 = vmatpush.msra.mxu0 0.0
    %357 = vmatpush.msra.mxu0 0.0
    %358 = vmatpush.msra.mxu0 0.0
    %359 = vmatpush.msra.mxu0 0.0
    %360 = vmatpush.msra.mxu0 0.0
    %361 = vmatpush.msra.mxu0 0.0
    %362 = vmatpush.msra.mxu0 0.0
    %363 = vmatpush.msra.mxu0 0.0
    %364 = vmatpush.msra.mxu0 0.0
    %365 = vmatpush.msra.mxu0 0.0
    %366 = vmatpush.msra.mxu0 %v352
    %367 = vmatpush.msra.mxu0 %v348
    %368 = vmatpush.msra.mxu0 %v347
    %369 = vmatpush.msra.mxu0 %v346
    %370 = vmatmul.f32.gmra.mxu0 %v159
    %v371 = vpop.f32.mrf.mxu0
    %v372 = vadd.f32 %v350, %v371
    %373 = vdwg.mxu0
    %v374 = vld [vmem:[#allocation7] sm:$0xff]
    %v375 = vld [vmem:[#allocation8] sm:$0xff]
    %v376 = vld [vmem:[#allocation8 + $0x8] sm:$0xff]
    %v377 = vld [vmem:[#allocation8 + $0x10] sm:$0xff]
    %v378 = vld [vmem:[#allocation8 + $0x18] sm:$0xff]
    %v379 = vld [vmem:[#allocation8 + $0x20] sm:$0xff]
    %v380 = vld [vmem:[#allocation8 + $0x28] sm:$0xff]
    %v381 = vld [vmem:[#allocation8 + $0x30] sm:$0xff]
    %v382 = vld [vmem:[#allocation8 + $0x38] sm:$0xff]
    %v383 = vld [vmem:[#allocation8 + $0x40] sm:$0xff]
    %v384 = vld [vmem:[#allocation8 + $0x48] sm:$0xff]
    %v385 = vld [vmem:[#allocation8 + $0x50] sm:$0xff]
    %v386 = vld [vmem:[#allocation8 + $0x58] sm:$0xff]
    %v387 = vld [vmem:[#allocation8 + $0x60] sm:$0xff]
    %v388 = vld [vmem:[#allocation8 + $0x68] sm:$0xff]
    %v389 = vld [vmem:[#allocation8 + $0x70] sm:$0xff]
    %v390 = vld [vmem:[#allocation8 + $0x78] sm:$0xff]
    %v391 = vld [vmem:[#allocation8 + $0x80] sm:$0xff]
    %v392 = vld [vmem:[#allocation8 + $0x88] sm:$0xff]
    %v393 = vld [vmem:[#allocation8 + $0x90] sm:$0xff]
    %v394 = vld [vmem:[#allocation8 + $0x98] sm:$0xff]
    %v395 = vld [vmem:[#allocation8 + $0xa0] sm:$0xff]
    %v396 = vld [vmem:[#allocation8 + $0xa8] sm:$0xff]
    %v397 = vld [vmem:[#allocation8 + $0xb0] sm:$0xff]
    %v398 = vld [vmem:[#allocation8 + $0xb8] sm:$0xff]
    %v399 = vld [vmem:[#allocation8 + $0xc0] sm:$0xff]
    %v400 = vld [vmem:[#allocation8 + $0xc8] sm:$0xff]
    %v401 = vld [vmem:[#allocation8 + $0xd0] sm:$0xff]
    %v402 = vld [vmem:[#allocation8 + $0xd8] sm:$0xff]
    %v403 = vld [vmem:[#allocation8 + $0xe0] sm:$0xff]
    %v404 = vld [vmem:[#allocation8 + $0xe8] sm:$0xff]
    %v405 = vld [vmem:[#allocation8 + $0xf0] sm:$0xff]
    %v406 = vld [vmem:[#allocation8 + $0xf8] sm:$0xff]
    %vm407 = vcmask 261120
    %v409 = vsel %vm407, %v374, 0
    %411 = vmatpush.msra.mxu0 0.0
    %412 = vmatpush.msra.mxu0 0.0
    %413 = vmatpush.msra.mxu0 0.0
    %414 = vmatpush.msra.mxu0 0.0
    %415 = vmatpush.msra.mxu0 0.0
    %416 = vmatpush.msra.mxu0 0.0
    %417 = vmatpush.msra.mxu0 0.0
    %418 = vmatpush.msra.mxu0 0.0
    %419 = vmatpush.msra.mxu0 0.0
    %420 = vmatpush.msra.mxu0 0.0
    %421 = vmatpush.msra.mxu0 0.0
    %422 = vmatpush.msra.mxu0 0.0
    %423 = vmatpush.msra.mxu0 %v399
    %424 = vmatpush.msra.mxu0 %v391
    %425 = vmatpush.msra.mxu0 %v383
    %426 = vmatpush.msra.mxu0 %v375
    %427 = vmatmul.f32.gmra.mxu0 %v409
    %v428 = vpop.f32.mrf.mxu0
    %v429 = vadd.f32 0.0, %v428
    %430 = vdwg.mxu0
    %431 = vmatpush.msra.mxu0 0.0
    %432 = vmatpush.msra.mxu0 0.0
    %433 = vmatpush.msra.mxu0 0.0
    %434 = vmatpush.msra.mxu0 0.0
    %435 = vmatpush.msra.mxu0 0.0
    %436 = vmatpush.msra.mxu0 0.0
    %437 = vmatpush.msra.mxu0 0.0
    %438 = vmatpush.msra.mxu0 0.0
    %439 = vmatpush.msra.mxu0 0.0
    %440 = vmatpush.msra.mxu0 0.0
    %441 = vmatpush.msra.mxu0 0.0
    %442 = vmatpush.msra.mxu0 0.0
    %443 = vmatpush.msra.mxu0 %v400
    %444 = vmatpush.msra.mxu0 %v392
    %445 = vmatpush.msra.mxu0 %v384
    %446 = vmatpush.msra.mxu0 %v376
    %447 = vmatmul.f32.gmra.mxu0 %v409
    %v448 = vpop.f32.mrf.mxu0
    %v449 = vadd.f32 0.0, %v448
    %450 = vdwg.mxu0
    %451 = vmatpush.msra.mxu0 0.0
    %452 = vmatpush.msra.mxu0 0.0
    %453 = vmatpush.msra.mxu0 0.0
    %454 = vmatpush.msra.mxu0 0.0
    %455 = vmatpush.msra.mxu0 0.0
    %456 = vmatpush.msra.mxu0 0.0
    %457 = vmatpush.msra.mxu0 0.0
    %458 = vmatpush.msra.mxu0 0.0
    %459 = vmatpush.msra.mxu0 0.0
    %460 = vmatpush.msra.mxu0 0.0
    %461 = vmatpush.msra.mxu0 0.0
    %462 = vmatpush.msra.mxu0 0.0
    %463 = vmatpush.msra.mxu0 %v401
    %464 = vmatpush.msra.mxu0 %v393
    %465 = vmatpush.msra.mxu0 %v385
    %466 = vmatpush.msra.mxu0 %v377
    %467 = vmatmul.f32.gmra.mxu0 %v409
    %v468 = vpop.f32.mrf.mxu0
    %v469 = vadd.f32 0.0, %v468
    %470 = vdwg.mxu0
    %471 = vmatpush.msra.mxu0 0.0
    %472 = vmatpush.msra.mxu0 0.0
    %473 = vmatpush.msra.mxu0 0.0
    %474 = vmatpush.msra.mxu0 0.0
    %475 = vmatpush.msra.mxu0 0.0
    %476 = vmatpush.msra.mxu0 0.0
    %477 = vmatpush.msra.mxu0 0.0
    %478 = vmatpush.msra.mxu0 0.0
    %479 = vmatpush.msra.mxu0 0.0
    %480 = vmatpush.msra.mxu0 0.0
    %481 = vmatpush.msra.mxu0 0.0
    %482 = vmatpush.msra.mxu0 0.0
    %483 = vmatpush.msra.mxu0 %v402
    %484 = vmatpush.msra.mxu0 %v394
    %485 = vmatpush.msra.mxu0 %v386
    %486 = vmatpush.msra.mxu0 %v378
    %487 = vmatmul.f32.gmra.mxu0 %v409
    %v488 = vpop.f32.mrf.mxu0
    %v489 = vadd.f32 0.0, %v488
    %490 = vdwg.mxu0
    %491 = vmatpush.msra.mxu0 0.0
    %492 = vmatpush.msra.mxu0 0.0
    %493 = vmatpush.msra.mxu0 0.0
    %494 = vmatpush.msra.mxu0 0.0
    %495 = vmatpush.msra.mxu0 0.0
    %496 = vmatpush.msra.mxu0 0.0
    %497 = vmatpush.msra.mxu0 0.0
    %498 = vmatpush.msra.mxu0 0.0
    %499 = vmatpush.msra.mxu0 0.0
    %500 = vmatpush.msra.mxu0 0.0
    %501 = vmatpush.msra.mxu0 0.0
    %502 = vmatpush.msra.mxu0 0.0
    %503 = vmatpush.msra.mxu0 %v403
    %504 = vmatpush.msra.mxu0 %v395
    %505 = vmatpush.msra.mxu0 %v387
    %506 = vmatpush.msra.mxu0 %v379
    %507 = vmatmul.f32.gmra.mxu0 %v409
    %v508 = vpop.f32.mrf.mxu0
    %v509 = vadd.f32 0.0, %v508
    %510 = vdwg.mxu0
    %511 = vmatpush.msra.mxu0 0.0
    %512 = vmatpush.msra.mxu0 0.0
    %513 = vmatpush.msra.mxu0 0.0
    %514 = vmatpush.msra.mxu0 0.0
    %515 = vmatpush.msra.mxu0 0.0
    %516 = vmatpush.msra.mxu0 0.0
    %517 = vmatpush.msra.mxu0 0.0
    %518 = vmatpush.msra.mxu0 0.0
    %519 = vmatpush.msra.mxu0 0.0
    %520 = vmatpush.msra.mxu0 0.0
    %521 = vmatpush.msra.mxu0 0.0
    %522 = vmatpush.msra.mxu0 0.0
    %523 = vmatpush.msra.mxu0 %v404
    %524 = vmatpush.msra.mxu0 %v396
    %525 = vmatpush.msra.mxu0 %v388
    %526 = vmatpush.msra.mxu0 %v380
    %527 = vmatmul.f32.gmra.mxu0 %v409
    %v528 = vpop.f32.mrf.mxu0
    %v529 = vadd.f32 0.0, %v528
    %530 = vdwg.mxu0
    %531 = vmatpush.msra.mxu0 0.0
    %532 = vmatpush.msra.mxu0 0.0
    %533 = vmatpush.msra.mxu0 0.0
    %534 = vmatpush.msra.mxu0 0.0
    %535 = vmatpush.msra.mxu0 0.0
    %536 = vmatpush.msra.mxu0 0.0
    %537 = vmatpush.msra.mxu0 0.0
    %538 = vmatpush.msra.mxu0 0.0
    %539 = vmatpush.msra.mxu0 0.0
    %540 = vmatpush.msra.mxu0 0.0
    %541 = vmatpush.msra.mxu0 0.0
    %542 = vmatpush.msra.mxu0 0.0
    %543 = vmatpush.msra.mxu0 %v405
    %544 = vmatpush.msra.mxu0 %v397
    %545 = vmatpush.msra.mxu0 %v389
    %546 = vmatpush.msra.mxu0 %v381
    %547 = vmatmul.f32.gmra.mxu0 %v409
    %v548 = vpop.f32.mrf.mxu0
    %v549 = vadd.f32 0.0, %v548
    %550 = vdwg.mxu0
    %551 = vmatpush.msra.mxu0 0.0
    %552 = vmatpush.msra.mxu0 0.0
    %553 = vmatpush.msra.mxu0 0.0
    %554 = vmatpush.msra.mxu0 0.0
    %555 = vmatpush.msra.mxu0 0.0
    %556 = vmatpush.msra.mxu0 0.0
    %557 = vmatpush.msra.mxu0 0.0
    %558 = vmatpush.msra.mxu0 0.0
    %559 = vmatpush.msra.mxu0 0.0
    %560 = vmatpush.msra.mxu0 0.0
    %561 = vmatpush.msra.mxu0 0.0
    %562 = vmatpush.msra.mxu0 0.0
    %563 = vmatpush.msra.mxu0 %v406
    %564 = vmatpush.msra.mxu0 %v398
    %565 = vmatpush.msra.mxu0 %v390
    %566 = vmatpush.msra.mxu0 %v382
    %567 = vmatmul.f32.gmra.mxu0 %v409
    %v568 = vpop.f32.mrf.mxu0
    %v569 = vadd.f32 0.0, %v568
    %570 = vdwg.mxu0
    %v571 = vperm.slane %v204, 0
    %v572 = vperm.slane %v224, 0
    %v573 = vperm.slane %v244, 0
    %v574 = vperm.slane %v264, 0
    %v575 = vperm.slane %v284, 0
    %v576 = vperm.slane %v304, 0
    %v577 = vperm.slane %v324, 0
    %v578 = vperm.slane %v344, 0
    %v579 = vmul.f32 %v429, %v571
    %v580 = vmul.f32 %v449, %v572
    %v581 = vmul.f32 %v469, %v573
    %v582 = vmul.f32 %v489, %v574
    %v583 = vmul.f32 %v509, %v575
    %v584 = vmul.f32 %v529, %v576
    %v585 = vmul.f32 %v549, %v577
    %v586 = vmul.f32 %v569, %v578
    %v587 = vld [vmem:[#allocation10] sm:$0xff]
    %v588 = vld [vmem:[#allocation10 + $0x8] sm:$0xff]
    %v589 = vld [vmem:[#allocation10 + $0x10] sm:$0xff]
    %v590 = vld [vmem:[#allocation10 + $0x18] sm:$0xff]
    %v591 = vld [vmem:[#allocation10 + $0x20] sm:$0xff]
    %v592 = vld [vmem:[#allocation10 + $0x28] sm:$0xff]
    %v593 = vld [vmem:[#allocation10 + $0x30] sm:$0xff]
    %v594 = vld [vmem:[#allocation10 + $0x38] sm:$0xff]
    %v595 = vld [vmem:[#allocation10 + $0x40] sm:$0xff]
    %v596 = vld [vmem:[#allocation10 + $0x48] sm:$0xff]
    %v597 = vld [vmem:[#allocation10 + $0x50] sm:$0xff]
    %v598 = vld [vmem:[#allocation10 + $0x58] sm:$0xff]
    %v599 = vld [vmem:[#allocation10 + $0x60] sm:$0xff]
    %v600 = vld [vmem:[#allocation10 + $0x68] sm:$0xff]
    %v601 = vld [vmem:[#allocation10 + $0x70] sm:$0xff]
    %v602 = vld [vmem:[#allocation10 + $0x78] sm:$0xff]
    %v603 = vld [vmem:[#allocation10 + $0x80] sm:$0xff]
    %v604 = vld [vmem:[#allocation10 + $0x88] sm:$0xff]
    %v605 = vld [vmem:[#allocation10 + $0x90] sm:$0xff]
    %v606 = vld [vmem:[#allocation10 + $0x98] sm:$0xff]
    %v607 = vld [vmem:[#allocation10 + $0xa0] sm:$0xff]
    %v608 = vld [vmem:[#allocation10 + $0xa8] sm:$0xff]
    %v609 = vld [vmem:[#allocation10 + $0xb0] sm:$0xff]
    %v610 = vld [vmem:[#allocation10 + $0xb8] sm:$0xff]
    %v611 = vld [vmem:[#allocation10 + $0xc0] sm:$0xff]
    %v612 = vld [vmem:[#allocation10 + $0xc8] sm:$0xff]
    %v613 = vld [vmem:[#allocation10 + $0xd0] sm:$0xff]
    %v614 = vld [vmem:[#allocation10 + $0xd8] sm:$0xff]
    %v615 = vld [vmem:[#allocation10 + $0xe0] sm:$0xff]
    %v616 = vld [vmem:[#allocation10 + $0xe8] sm:$0xff]
    %v617 = vld [vmem:[#allocation10 + $0xf0] sm:$0xff]
    %v618 = vld [vmem:[#allocation10 + $0xf8] sm:$0xff]
    %v619 = vperm.slane %v372, 0
    %620 = vmatpush.xpose.msra.mxu0 0.0
    %621 = vmatpush.xpose.msra.mxu0 0.0
    %622 = vmatpush.xpose.msra.mxu0 0.0
    %623 = vmatpush.xpose.msra.mxu0 0.0
    %624 = vmatpush.xpose.msra.mxu0 0.0
    %625 = vmatpush.xpose.msra.mxu0 0.0
    %626 = vmatpush.xpose.msra.mxu0 0.0
    %627 = vmatpush.xpose.msra.mxu0 0.0
    %628 = vmatpush.xpose.msra.mxu0 0.0
    %629 = vmatpush.xpose.msra.mxu0 0.0
    %630 = vmatpush.xpose.msra.mxu0 0.0
    %631 = vmatpush.xpose.msra.mxu0 0.0
    %632 = vmatpush.xpose.msra.mxu0 %v611
    %633 = vmatpush.xpose.msra.mxu0 %v603
    %634 = vmatpush.xpose.msra.mxu0 %v595
    %635 = vmatpush.xpose.msra.mxu0 %v587
    %636 = vmatmul.f32.gmra.mxu0 %v579
    %v637 = vpop.f32.mrf.mxu0
    %v638 = vadd.f32 %v619, %v637
    %639 = vdwg.mxu0
    %640 = vmatpush.xpose.msra.mxu0 0.0
    %641 = vmatpush.xpose.msra.mxu0 0.0
    %642 = vmatpush.xpose.msra.mxu0 0.0
    %643 = vmatpush.xpose.msra.mxu0 0.0
    %644 = vmatpush.xpose.msra.mxu0 0.0
    %645 = vmatpush.xpose.msra.mxu0 0.0
    %646 = vmatpush.xpose.msra.mxu0 0.0
    %647 = vmatpush.xpose.msra.mxu0 0.0
    %648 = vmatpush.xpose.msra.mxu0 0.0
    %649 = vmatpush.xpose.msra.mxu0 0.0
    %650 = vmatpush.xpose.msra.mxu0 0.0
    %651 = vmatpush.xpose.msra.mxu0 0.0
    %652 = vmatpush.xpose.msra.mxu0 %v612
    %653 = vmatpush.xpose.msra.mxu0 %v604
    %654 = vmatpush.xpose.msra.mxu0 %v596
    %655 = vmatpush.xpose.msra.mxu0 %v588
    %656 = vmatmul.f32.gmra.mxu0 %v580
    %v657 = vpop.f32.mrf.mxu0
    %v658 = vadd.f32 %v638, %v657
    %659 = vdwg.mxu0
    %660 = vmatpush.xpose.msra.mxu0 0.0
    %661 = vmatpush.xpose.msra.mxu0 0.0
    %662 = vmatpush.xpose.msra.mxu0 0.0
    %663 = vmatpush.xpose.msra.mxu0 0.0
    %664 = vmatpush.xpose.msra.mxu0 0.0
    %665 = vmatpush.xpose.msra.mxu0 0.0
    %666 = vmatpush.xpose.msra.mxu0 0.0
    %667 = vmatpush.xpose.msra.mxu0 0.0
    %668 = vmatpush.xpose.msra.mxu0 0.0
    %669 = vmatpush.xpose.msra.mxu0 0.0
    %670 = vmatpush.xpose.msra.mxu0 0.0
    %671 = vmatpush.xpose.msra.mxu0 0.0
    %672 = vmatpush.xpose.msra.mxu0 %v613
    %673 = vmatpush.xpose.msra.mxu0 %v605
    %674 = vmatpush.xpose.msra.mxu0 %v597
    %675 = vmatpush.xpose.msra.mxu0 %v589
    %676 = vmatmul.f32.gmra.mxu0 %v581
    %v677 = vpop.f32.mrf.mxu0
    %v678 = vadd.f32 %v658, %v677
    %679 = vdwg.mxu0
    %680 = vmatpush.xpose.msra.mxu0 0.0
    %681 = vmatpush.xpose.msra.mxu0 0.0
    %682 = vmatpush.xpose.msra.mxu0 0.0
    %683 = vmatpush.xpose.msra.mxu0 0.0
    %684 = vmatpush.xpose.msra.mxu0 0.0
    %685 = vmatpush.xpose.msra.mxu0 0.0
    %686 = vmatpush.xpose.msra.mxu0 0.0
    %687 = vmatpush.xpose.msra.mxu0 0.0
    %688 = vmatpush.xpose.msra.mxu0 0.0
    %689 = vmatpush.xpose.msra.mxu0 0.0
    %690 = vmatpush.xpose.msra.mxu0 0.0
    %691 = vmatpush.xpose.msra.mxu0 0.0
    %692 = vmatpush.xpose.msra.mxu0 %v614
    %693 = vmatpush.xpose.msra.mxu0 %v606
    %694 = vmatpush.xpose.msra.mxu0 %v598
    %695 = vmatpush.xpose.msra.mxu0 %v590
    %696 = vmatmul.f32.gmra.mxu0 %v582
    %v697 = vpop.f32.mrf.mxu0
    %v698 = vadd.f32 %v678, %v697
    %699 = vdwg.mxu0
    %700 = vmatpush.xpose.msra.mxu0 0.0
    %701 = vmatpush.xpose.msra.mxu0 0.0
    %702 = vmatpush.xpose.msra.mxu0 0.0
    %703 = vmatpush.xpose.msra.mxu0 0.0
    %704 = vmatpush.xpose.msra.mxu0 0.0
    %705 = vmatpush.xpose.msra.mxu0 0.0
    %706 = vmatpush.xpose.msra.mxu0 0.0
    %707 = vmatpush.xpose.msra.mxu0 0.0
    %708 = vmatpush.xpose.msra.mxu0 0.0
    %709 = vmatpush.xpose.msra.mxu0 0.0
    %710 = vmatpush.xpose.msra.mxu0 0.0
    %711 = vmatpush.xpose.msra.mxu0 0.0
    %712 = vmatpush.xpose.msra.mxu0 %v615
    %713 = vmatpush.xpose.msra.mxu0 %v607
    %714 = vmatpush.xpose.msra.mxu0 %v599
    %715 = vmatpush.xpose.msra.mxu0 %v591
    %716 = vmatmul.f32.gmra.mxu0 %v583
    %v717 = vpop.f32.mrf.mxu0
    %v718 = vadd.f32 %v698, %v717
    %719 = vdwg.mxu0
    %720 = vmatpush.xpose.msra.mxu0 0.0
    %721 = vmatpush.xpose.msra.mxu0 0.0
    %722 = vmatpush.xpose.msra.mxu0 0.0
    %723 = vmatpush.xpose.msra.mxu0 0.0
    %724 = vmatpush.xpose.msra.mxu0 0.0
    %725 = vmatpush.xpose.msra.mxu0 0.0
    %726 = vmatpush.xpose.msra.mxu0 0.0
    %727 = vmatpush.xpose.msra.mxu0 0.0
    %728 = vmatpush.xpose.msra.mxu0 0.0
    %729 = vmatpush.xpose.msra.mxu0 0.0
    %730 = vmatpush.xpose.msra.mxu0 0.0
    %731 = vmatpush.xpose.msra.mxu0 0.0
    %732 = vmatpush.xpose.msra.mxu0 %v616
    %733 = vmatpush.xpose.msra.mxu0 %v608
    %734 = vmatpush.xpose.msra.mxu0 %v600
    %735 = vmatpush.xpose.msra.mxu0 %v592
    %736 = vmatmul.f32.gmra.mxu0 %v584
    %v737 = vpop.f32.mrf.mxu0
    %v738 = vadd.f32 %v718, %v737
    %739 = vdwg.mxu0
    %740 = vmatpush.xpose.msra.mxu0 0.0
    %741 = vmatpush.xpose.msra.mxu0 0.0
    %742 = vmatpush.xpose.msra.mxu0 0.0
    %743 = vmatpush.xpose.msra.mxu0 0.0
    %744 = vmatpush.xpose.msra.mxu0 0.0
    %745 = vmatpush.xpose.msra.mxu0 0.0
    %746 = vmatpush.xpose.msra.mxu0 0.0
    %747 = vmatpush.xpose.msra.mxu0 0.0
    %748 = vmatpush.xpose.msra.mxu0 0.0
    %749 = vmatpush.xpose.msra.mxu0 0.0
    %750 = vmatpush.xpose.msra.mxu0 0.0
    %751 = vmatpush.xpose.msra.mxu0 0.0
    %752 = vmatpush.xpose.msra.mxu0 %v617
    %753 = vmatpush.xpose.msra.mxu0 %v609
    %754 = vmatpush.xpose.msra.mxu0 %v601
    %755 = vmatpush.xpose.msra.mxu0 %v593
    %756 = vmatmul.f32.gmra.mxu0 %v585
    %v757 = vpop.f32.mrf.mxu0
    %v758 = vadd.f32 %v738, %v757
    %759 = vdwg.mxu0
    %760 = vmatpush.xpose.msra.mxu0 0.0
    %761 = vmatpush.xpose.msra.mxu0 0.0
    %762 = vmatpush.xpose.msra.mxu0 0.0
    %763 = vmatpush.xpose.msra.mxu0 0.0
    %764 = vmatpush.xpose.msra.mxu0 0.0
    %765 = vmatpush.xpose.msra.mxu0 0.0
    %766 = vmatpush.xpose.msra.mxu0 0.0
    %767 = vmatpush.xpose.msra.mxu0 0.0
    %768 = vmatpush.xpose.msra.mxu0 0.0
    %769 = vmatpush.xpose.msra.mxu0 0.0
    %770 = vmatpush.xpose.msra.mxu0 0.0
    %771 = vmatpush.xpose.msra.mxu0 0.0
    %772 = vmatpush.xpose.msra.mxu0 %v618
    %773 = vmatpush.xpose.msra.mxu0 %v610
    %774 = vmatpush.xpose.msra.mxu0 %v602
    %775 = vmatpush.xpose.msra.mxu0 %v594
    %776 = vmatmul.f32.gmra.mxu0 %v586
    %v777 = vpop.f32.mrf.mxu0
    %v778 = vadd.f32 %v758, %v777
    %779 = vdwg.mxu0
    %780 = vst.msk [vmem:[#allocation11] sm:$0xff] %vm407, %v778
    // Predicated region
    $region54: #{hyperfc2_forward.1} parent=1 // pred_check
      _
    $region55: #{hyperfc2_forward.1} parent=1 // pred_check_branch
      %782 = sbr.rel (0) target = $region57
    $region56: #{hyperfc2_forward.1} parent=1 // pred_region
      %784 = vsyncadd [#allocation4], 0
      %s786 = sshll.u32 [#allocation11], 4
      %s787 = int_to_ptr.vmem [resolvable:$true] %s786
      %s788 = sshll.u32 %s8, 4
      %s789 = int_to_ptr.hbm [resolvable:$true] %s788
      %791 = dma.vmem_to_hbm [thread:$0]  %s787, 128, %s789, [#allocation4]
    $region57: #{hyperfc2_forward.1} parent=1 // pred_fallthru
      _
    // Predicated region
    $region58: #{hyperfc2_forward.1} parent=1 // pred_check
      _
    $region59: #{hyperfc2_forward.1} parent=1 // pred_check_branch
      %793 = sbr.rel (0) target = $region61
    $region60: #{hyperfc2_forward.1} parent=1 // pred_region
      %795 = dma.done [#allocation4], 128
    $region61: #{hyperfc2_forward.1} parent=1 // pred_fallthru
      _
    %796 = vsyncpa [#allocation3], 1
    %797 = vsyncpa [#allocation6], 1
    %798 = vsyncpa [#allocation9], 1
    %799 = vsyncpa [#allocation4], 1

</llo_original>
